<compile_context>
chip_gen: v5e
topology: v5e:2x2
jax: 0.10.0
libtpu: 0.0.40
codegen_flags: <defaults>
</compile_context>

<pallas_src>
import functools

import numpy as np
import jax
import jax.numpy as jnp
from jax.experimental import pallas as pl
from jax.experimental.pallas import tpu as pltpu

try:  # prefer scipy's C implementation; fall back to pure numpy JV
    from scipy.optimize import linear_sum_assignment as _scipy_lsa
except Exception:  # pragma: no cover
    _scipy_lsa = None


def _round_up(x, m):
    return ((x + m - 1) // m) * m


# ----------------------------------------------------------------------------
# Pallas kernel 1: per-image matcher cost blocks
#   cost[b, q, t] = w_point * ||points[b,q] - tgt_pts[b,t]||_2
#                 - w_class * softmax(logits[b,q])[tgt_ids[b,t]]
# Grid: (B, Q_pad/TM, T_pad/TN), target axis innermost ("arbitrary") so the
# per-row class-probability scratch is filled once per row tile and reused.
# ----------------------------------------------------------------------------
def _cost_kernel(w_class, w_point, num_cls,
                 logits_ref, points_ref, tgt_pts_t_ref, tgt_ids_ref,
                 out_ref, q_scr):
    j = pl.program_id(2)

    # Hoisted per-row work: class probabilities (scaled by -w_class) computed
    # only on the first target tile of each row tile, reused for the rest.
    @pl.when(j == 0)
    def _fill_scratch():
        logits = logits_ref[...].astype(jnp.float32)          # (TM, C)
        if num_cls == 2:
            # Binary softmax == sigmoid of the logit difference (EUP op, no
            # lane reduction).  1/(1+exp(-d)) saturates correctly to 0/1 for
            # extreme |d| (no NaN), which is all we need here.
            d = logits[:, 1:2] - logits[:, 0:1]               # (TM, 1)
            p1 = 1.0 / (1.0 + jnp.exp(-d))
            q_scr[:, 1:2] = -w_class * p1
            q_scr[:, 0:1] = -w_class * (1.0 - p1)
        else:
            m = jnp.max(logits, axis=-1, keepdims=True)
            e = jnp.exp(logits - m)
            prob = e / jnp.sum(e, axis=-1, keepdims=True)     # (TM, C)
            q_scr[...] = -w_class * prob

    ids = tgt_ids_ref[...]                                    # (1, TN) int32

    # Class gather via VPU selects (C is tiny); q_scr already carries -w_class.
    cc = jnp.zeros(out_ref.shape, jnp.float32)                # (TM, TN)
    for c in range(num_cls):
        cc = jnp.where(ids == c, q_scr[:, c:c + 1], cc)

    # L2 cdist; target points arrive transposed (2, TN) -> lane-dense.
    px = points_ref[:, 0:1]
    py = points_ref[:, 1:2]
    tx = tgt_pts_t_ref[0:1, :]
    ty = tgt_pts_t_ref[1:2, :]
    dx = px - tx
    dy = py - ty
    out_ref[...] = cc + w_point * jnp.sqrt(dx * dx + dy * dy)


def compute_cost_blocks(pred_logits, pred_points, tgt_pts_b, tgt_ids_b,
                        w_class, w_point, tm=256, tn=512):
    """pred_logits (B,Q,C) f32, pred_points (B,Q,2) f32,
    tgt_pts_b (B,2,T_pad) f32, tgt_ids_b (B,1,T_pad) i32.
    Returns (cost (B,Q_pad,T_pad) f32, Q_pad)."""
    B, Q, C = pred_logits.shape
    T_pad = int(tgt_ids_b.shape[-1])          # already a multiple of 128

    q8 = _round_up(Q, 8)
    if q8 <= tm:
        TM, Q_pad = q8, q8
    else:
        TM = tm
        Q_pad = _round_up(Q, TM)

    if T_pad <= tn:
        TN = T_pad
    else:
        TN = max(c for c in (128, 256, 512, 1024) if c <= tn and T_pad % c == 0)

    logits_p = pred_logits.astype(jnp.float32)
    points_p = pred_points.astype(jnp.float32)
    if Q_pad != Q:
        logits_p = jnp.pad(logits_p, ((0, 0), (0, Q_pad - Q), (0, 0)))
        points_p = jnp.pad(points_p, ((0, 0), (0, Q_pad - Q), (0, 0)))

    kernel = functools.partial(_cost_kernel, float(w_class), float(w_point),
                               int(C))
    grid = (B, Q_pad // TM, T_pad // TN)
    cost = pl.pallas_call(
        kernel,
        out_shape=jax.ShapeDtypeStruct((B, Q_pad, T_pad), jnp.float32),
        grid=grid,
        in_specs=[
            pl.BlockSpec((None, TM, C), lambda b, i, j: (b, i, 0)),
            pl.BlockSpec((None, TM, 2), lambda b, i, j: (b, i, 0)),
            pl.BlockSpec((None, 2, TN), lambda b, i, j: (b, 0, j)),
            pl.BlockSpec((None, 1, TN), lambda b, i, j: (b, 0, j)),
        ],
        out_specs=pl.BlockSpec((None, TM, TN), lambda b, i, j: (b, i, j)),
        scratch_shapes=[pltpu.VMEM((TM, C), jnp.float32)],
        compiler_params=pltpu.CompilerParams(
            dimension_semantics=("parallel", "parallel", "arbitrary")),
    )(logits_p, points_p, tgt_pts_b, tgt_ids_b)
    return cost, Q_pad


# ----------------------------------------------------------------------------
# Pallas kernel 2: losses (lane-dense transposed layouts, tiled over N)
#   loss_ce  = sum_n w[tgt_n]*(logsumexp(logits_n) - logits_n[tgt_n]) / sum_n w[tgt_n]
#   pts_sum  = sum((src_pts - tgt_pts)^2)   (divided by num_boxes outside)
# Padded query columns carry tgt == -1 -> weight 0 -> no contribution.
# ----------------------------------------------------------------------------
def _loss_kernel(class_w,
                 logits_t_ref, tgt_ref, src_pts_t_ref, tgt_pts_t_ref,
                 ce_ref, pts_ref, wnll_acc, wsum_acc):
    step = pl.program_id(0)

    @pl.when(step == 0)
    def _init():
        wnll_acc[...] = jnp.zeros_like(wnll_acc)
        wsum_acc[...] = jnp.zeros_like(wsum_acc)

    logits = logits_t_ref[...].astype(jnp.float32)            # (C, TN)
    tgt = tgt_ref[...]                                        # (1, TN) int32
    C = logits.shape[0]

    # logsumexp over the (small) class axis, lane-dense along queries.
    m = logits[0:1, :]
    for c in range(1, C):
        m = jnp.maximum(m, logits[c:c + 1, :])
    s = jnp.zeros_like(m)
    for c in range(C):
        s = s + jnp.exp(logits[c:c + 1, :] - m)
    lse = m + jnp.log(s)

    picked = jnp.zeros_like(m)
    wn = jnp.zeros_like(m)
    for c in range(C):
        sel = tgt == c
        picked = jnp.where(sel, logits[c:c + 1, :], picked)
        wn = jnp.where(sel, class_w[c], wn)

    wnll_acc[0, 0] += jnp.sum(wn * (lse - picked))
    wsum_acc[0, 0] += jnp.sum(wn)

    @pl.when(step == pl.num_programs(0) - 1)
    def _finalize():
        ce_ref[0, 0] = wnll_acc[0, 0] / wsum_acc[0, 0]
        d = src_pts_t_ref[...] - tgt_pts_t_ref[...]           # (2, M_pad)
        pts_ref[0, 0] = jnp.sum(d * d)


def compute_losses(logits_flat, target_classes_np, class_weights_np,
                   src_pts_np, tgt_pts_np, tn=2048):
    N, C = logits_flat.shape
    N_pad = _round_up(N, 128)
    if N_pad <= tn:
        TN = N_pad
    else:
        TN = max(c for c in (128, 256, 512, 1024, 2048)
                 if c <= tn and N_pad % c == 0)

    M = int(src_pts_np.shape[0])
    M_pad = _round_up(max(M, 1), 128)

    logits_t = jnp.transpose(logits_flat.astype(jnp.float32))  # (C, N)
    if N_pad != N:
        logits_t = jnp.pad(logits_t, ((0, 0), (0, N_pad - N)))

    tgt = np.full((1, N_pad), -1, np.int32)
    tgt[0, :N] = target_classes_np.reshape(-1).astype(np.int32)

    src_t = np.zeros((2, M_pad), np.float32)
    tgt_t = np.zeros((2, M_pad), np.float32)
    if M:
        src_t[:, :M] = src_pts_np.astype(np.float32).T
        tgt_t[:, :M] = tgt_pts_np.astype(np.float32).T

    kernel = functools.partial(_loss_kernel,
                               tuple(float(w) for w in class_weights_np))
    grid = (N_pad // TN,)
    ce, pts = pl.pallas_call(
        kernel,
        out_shape=(jax.ShapeDtypeStruct((1, 1), jnp.float32),
                   jax.ShapeDtypeStruct((1, 1), jnp.float32)),
        grid=grid,
        in_specs=[
            pl.BlockSpec((C, TN), lambda i: (0, i)),
            pl.BlockSpec((1, TN), lambda i: (0, i)),
            pl.BlockSpec((2, M_pad), lambda i: (0, 0)),
            pl.BlockSpec((2, M_pad), lambda i: (0, 0)),
        ],
        out_specs=(pl.BlockSpec((1, 1), lambda i: (0, 0)),
                   pl.BlockSpec((1, 1), lambda i: (0, 0))),
        scratch_shapes=[pltpu.VMEM((1, 1), jnp.float32),
                        pltpu.VMEM((1, 1), jnp.float32)],
        compiler_params=pltpu.CompilerParams(
            dimension_semantics=("arbitrary",)),
    )(logits_t, jnp.asarray(tgt), jnp.asarray(src_t), jnp.asarray(tgt_t))
    return ce[0, 0], pts[0, 0]


# ----------------------------------------------------------------------------
# Host-side Hungarian assignment.
# TODO(synk): linear_sum_assignment is an inherently sequential augmenting-path
# algorithm; it stays on host (scipy if available, numpy JV fallback).
# ----------------------------------------------------------------------------
def _lsa_numpy(cost):
    cost = np.asarray(cost, dtype=np.float64)
    transposed = False
    if cost.shape[0] > cost.shape[1]:
        cost = cost.T
        transposed = True
    n, mcols = cost.shape  # n <= mcols
    INF = float("inf")
    u = np.zeros(n + 1)
    v = np.zeros(mcols + 1)
    p = np.zeros(mcols + 1, dtype=np.int64)
    way = np.zeros(mcols + 1, dtype=np.int64)
    for i in range(1, n + 1):
        p[0] = i
        j0 = 0
        minv = np.full(mcols + 1, INF)
        used = np.zeros(mcols + 1, dtype=bool)
        while True:
            used[j0] = True
            i0 = p[j0]
            delta = INF
            j1 = -1
            for j in range(1, mcols + 1):
                if not used[j]:
                    cur = cost[i0 - 1, j - 1] - u[i0] - v[j]
                    if cur < minv[j]:
                        minv[j] = cur
                        way[j] = j0
                    if minv[j] < delta:
                        delta = minv[j]
                        j1 = j
            for j in range(mcols + 1):
                if used[j]:
                    u[p[j]] += delta
                    v[j] -= delta
                else:
                    minv[j] -= delta
            j0 = j1
            if p[j0] == 0:
                break
        while True:
            j1 = way[j0]
            p[j0] = p[j1]
            j0 = j1
            if j0 == 0:
                break
    rows, cols = [], []
    for j in range(1, mcols + 1):
        if p[j] != 0:
            rows.append(p[j] - 1)
            cols.append(j - 1)
    rows = np.asarray(rows, dtype=np.int64)
    cols = np.asarray(cols, dtype=np.int64)
    if transposed:
        rows, cols = cols, rows
    order = np.argsort(rows)
    return rows[order], cols[order]


def linear_sum_assignment_host(cost):
    if cost.shape[1] == 0 or cost.shape[0] == 0:
        return (np.zeros((0,), np.int64), np.zeros((0,), np.int64))
    if _scipy_lsa is not None:
        r, c = _scipy_lsa(cost)
        return np.asarray(r, np.int64), np.asarray(c, np.int64)
    return _lsa_numpy(cost)


# ----------------------------------------------------------------------------
# SetCriterion_Crowd forward (JAX/Pallas version)
# ----------------------------------------------------------------------------
class SetCriterionCrowd:
    def __init__(self, num_classes, cost_class=1.0, cost_point=0.05,
                 eos_coef=0.5, losses=("labels", "points")):
        self.num_classes = num_classes
        self.cost_class = cost_class
        self.cost_point = cost_point
        self.eos_coef = eos_coef
        self.losses = list(losses)
        ew = np.ones(num_classes + 1, dtype=np.float32)
        ew[0] = eos_coef                      # background / no-object = class 0
        self.empty_weight = ew

    def __call__(self, outputs, targets):
        pred_logits = outputs["pred_logits"]          # (B, Q, C)
        pred_points = outputs["pred_points"]          # (B, Q, 2)
        B, Q, C = pred_logits.shape

        # Targets are tiny; one host copy used both for padding and the
        # matched-gather glue below.
        tgt_host = jax.device_get([(t["labels"], t["point"]) for t in targets])
        sizes = [int(lbl.shape[0]) for lbl, _ in tgt_host]
        T_max = max(sizes) if sizes else 0
        T_pad = _round_up(max(T_max, 1), 128)         # 128-granular padding

        tgt_pts_b = np.zeros((B, 2, T_pad), np.float32)
        tgt_ids_b = np.zeros((B, 1, T_pad), np.int32)
        for b, (lbl, pts) in enumerate(tgt_host):
            sz = sizes[b]
            if sz:
                tgt_pts_b[b, :, :sz] = np.asarray(pts, np.float32).T
                tgt_ids_b[b, 0, :sz] = np.asarray(lbl, np.int32)

        # --- matcher: per-image block-diagonal cost blocks on TPU ---
        cost, Q_pad = compute_cost_blocks(
            pred_logits, pred_points,
            jnp.asarray(tgt_pts_b), jnp.asarray(tgt_ids_b),
            self.cost_class, self.cost_point)
        if Q_pad != Q:                                # de-pad rows on device
            cost = cost[:, :Q, :]

        # One batched host transfer (cost blocks + predicted points).
        cost_np, pred_points_np = jax.device_get((cost, pred_points))
        cost_np = np.asarray(cost_np)
        pred_points_np = np.asarray(pred_points_np)

        # --- Hungarian assignment on host per image (only valid columns) ---
        indices = [linear_sum_assignment_host(cost_np[b, :, :sizes[b]])
                   for b in range(B)]

        # --- build matched tensors (host glue, numpy only) ---
        target_classes = np.zeros((B, Q), dtype=np.int32)
        src_list, tgt_list = [], []
        for b, (src_i, tgt_j) in enumerate(indices):
            src_i = np.asarray(src_i)
            tgt_j = np.asarray(tgt_j)
            if src_i.size:
                lbl_b = np.asarray(tgt_host[b][0])
                pts_b = np.asarray(tgt_host[b][1], np.float32)
                target_classes[b, src_i] = lbl_b[tgt_j].astype(np.int32)
                src_list.append(pred_points_np[b, src_i])
                tgt_list.append(pts_b[tgt_j])
        if src_list:
            src_all = np.concatenate(src_list, axis=0).astype(np.float32)
            tgt_all = np.concatenate(tgt_list, axis=0).astype(np.float32)
        else:
            src_all = np.zeros((0, 2), np.float32)
            tgt_all = np.zeros((0, 2), np.float32)

        num_points = float(sum(sizes))
        num_boxes = max(num_points, 1.0)              # world_size == 1

        loss_ce, pts_sum = compute_losses(
            pred_logits.reshape(B * Q, C), target_classes,
            self.empty_weight, src_all, tgt_all)

        out = {}
        if "labels" in self.losses:
            out["loss_ce"] = loss_ce
        if "points" in self.losses:
            out["loss_points"] = pts_sum / num_boxes
        return out


# ----------------------------------------------------------------------------
if __name__ == "__main__":
    key = jax.random.PRNGKey(0)
    B, Q = 2, 8
    num_classes = 1                       # crowd counting: {no-object, person}
    Ccls = num_classes + 1

    k1, k2, k3, _ = jax.random.split(key, 4)
    pred_logits = jax.random.normal(k1, (B, Q, Ccls), dtype=jnp.float32)
    pred_points = jax.random.uniform(k2, (B, Q, 2), dtype=jnp.float32) * 16.0

    sizes = [3, 5]
    tgt_keys = jax.random.split(k3, len(sizes))
    targets = []
    for b, sz in enumerate(sizes):
        pts = jax.random.uniform(tgt_keys[b], (sz, 2), dtype=jnp.float32) * 16.0
        labels = jnp.ones((sz,), dtype=jnp.int32)     # class 1 = person
        targets.append({"point": pts, "labels": labels})

    criterion = SetCriterionCrowd(num_classes=num_classes,
                                  cost_class=1.0, cost_point=0.05,
                                  eos_coef=0.5, losses=("labels", "points"))
    losses = criterion({"pred_logits": pred_logits,
                        "pred_points": pred_points}, targets)
    losses = {k: jax.block_until_ready(v) for k, v in losses.items()}
    # values available for inspection: losses['loss_ce'], losses['loss_points']
    print("KERNEL_OK")
</pallas_src>

<mosaic_0001>
module attributes {stable_mosaic.version = 11 : i64} {
  func.func @_cost_kernel(%arg0: i32, %arg1: i32, %arg2: i32, %arg3: memref<1x8x2xf32, #tpu.memory_space<vmem>>, %arg4: memref<1x8x2xf32, #tpu.memory_space<vmem>>, %arg5: memref<1x2x128xf32, #tpu.memory_space<vmem>>, %arg6: memref<1x1x128xi32, #tpu.memory_space<vmem>>, %arg7: memref<1x8x128xf32, #tpu.memory_space<vmem>>, %arg8: memref<8x2xf32, #tpu.memory_space<vmem>>) attributes {dimension_semantics = [#tpu.dimension_semantics<parallel>, #tpu.dimension_semantics<parallel>, #tpu.dimension_semantics<arbitrary>], iteration_bounds = array<i64: 2, 1, 1>, scalar_prefetch = 0 : i64, scratch_operands = 1 : i64, tpu.core_type = #tpu.core_type<tc>, window_params = [{transform_indices = @transform_0, window_bounds = array<i64: 1, 8, 2>}, {transform_indices = @transform_1, window_bounds = array<i64: 1, 8, 2>}, {transform_indices = @transform_2, window_bounds = array<i64: 1, 2, 128>}, {transform_indices = @transform_3, window_bounds = array<i64: 1, 1, 128>}, {transform_indices = @transform_4, window_bounds = array<i64: 1, 8, 128>}]} {
    %c0_i32 = arith.constant 0 : i32
    %0 = arith.cmpi eq, %arg2, %c0_i32 : i32
    %1 = arith.extui %0 : i1 to i32
    %c0_i32_0 = arith.constant 0 : i32
    %2 = arith.cmpi ne, %1, %c0_i32_0 : i32
    scf.if %2 {
      %c0_23 = arith.constant 0 : index
      %c0_24 = arith.constant 0 : index
      %c0_25 = arith.constant 0 : index
      %46 = vector.load %arg3[%c0_23, %c0_24, %c0_25] : memref<1x8x2xf32, #tpu.memory_space<vmem>>, vector<1x8x2xf32>
      %47 = vector.shape_cast %46 : vector<1x8x2xf32> to vector<8x2xf32>
      %48 = vector.extract_strided_slice %47 {offsets = [0, 1], sizes = [8, 1], strides = [1, 1]} : vector<8x2xf32> to vector<8x1xf32>
      %49 = vector.extract_strided_slice %47 {offsets = [0, 0], sizes = [8, 1], strides = [1, 1]} : vector<8x2xf32> to vector<8x1xf32>
      %50 = arith.subf %48, %49 : vector<8x1xf32>
      %cst_26 = arith.constant 0.000000e+00 : f32
      %51 = vector.broadcast %cst_26 : f32 to vector<8x1xf32>
      %52 = arith.subf %51, %50 : vector<8x1xf32>
      %53 = math.exp %52 : vector<8x1xf32>
      %cst_27 = arith.constant 1.000000e+00 : f32
      %54 = vector.broadcast %cst_27 : f32 to vector<8x1xf32>
      %55 = arith.addf %54, %53 : vector<8x1xf32>
      %cst_28 = arith.constant 1.000000e+00 : f32
      %56 = vector.broadcast %cst_28 : f32 to vector<8x1xf32>
      %57 = arith.divf %56, %55 : vector<8x1xf32>
      %cst_29 = arith.constant -1.000000e+00 : f32
      %58 = vector.broadcast %cst_29 : f32 to vector<8x1xf32>
      %59 = arith.mulf %58, %57 : vector<8x1xf32>
      %c0_30 = arith.constant 0 : index
      %c1_31 = arith.constant 1 : index
      %60 = vector.load %arg8[%c0_30, %c1_31] : memref<8x2xf32, #tpu.memory_space<vmem>>, vector<8x1xf32>
      tpu.vector_store %arg8[%c0_30, %c1_31], %59 {strides = array<i32>} : memref<8x2xf32, #tpu.memory_space<vmem>>, vector<8x1xf32>,
      %cst_32 = arith.constant 1.000000e+00 : f32
      %61 = vector.broadcast %cst_32 : f32 to vector<8x1xf32>
      %62 = arith.subf %61, %57 : vector<8x1xf32>
      %cst_33 = arith.constant -1.000000e+00 : f32
      %63 = vector.broadcast %cst_33 : f32 to vector<8x1xf32>
      %64 = arith.mulf %63, %62 : vector<8x1xf32>
      %c0_34 = arith.constant 0 : index
      %c0_35 = arith.constant 0 : index
      %65 = vector.load %arg8[%c0_34, %c0_35] : memref<8x2xf32, #tpu.memory_space<vmem>>, vector<8x1xf32>
      tpu.vector_store %arg8[%c0_34, %c0_35], %64 {strides = array<i32>} : memref<8x2xf32, #tpu.memory_space<vmem>>, vector<8x1xf32>,
    } else {
    }
    %c0 = arith.constant 0 : index
    %c0_1 = arith.constant 0 : index
    %c0_2 = arith.constant 0 : index
    %3 = vector.load %arg6[%c0, %c0_1, %c0_2] : memref<1x1x128xi32, #tpu.memory_space<vmem>>, vector<1x1x128xi32>
    %4 = vector.shape_cast %3 : vector<1x1x128xi32> to vector<1x128xi32>
    %cst = arith.constant 0.000000e+00 : f32
    %5 = vector.broadcast %cst : f32 to vector<8x128xf32>
    %c0_i32_3 = arith.constant 0 : i32
    %6 = vector.broadcast %c0_i32_3 : i32 to vector<1x128xi32>
    %7 = arith.cmpi eq, %4, %6 : vector<1x128xi32>
    %c0_4 = arith.constant 0 : index
    %c0_5 = arith.constant 0 : index
    %8 = vector.load %arg8[%c0_4, %c0_5] : memref<8x2xf32, #tpu.memory_space<vmem>>, vector<8x1xf32>
    %9 = vector.shape_cast %7 : vector<1x128xi1> to vector<1x128xi1>
    %10 = vector.broadcast %9 : vector<1x128xi1> to vector<8x128xi1>
    %11 = vector.shape_cast %8 : vector<8x1xf32> to vector<8x1xf32>
    %12 = vector.broadcast %11 : vector<8x1xf32> to vector<8x128xf32>
    %13 = arith.select %10, %12, %5 : vector<8x128xi1>, vector<8x128xf32>
    %c1_i32 = arith.constant 1 : i32
    %14 = vector.broadcast %c1_i32 : i32 to vector<1x128xi32>
    %15 = arith.cmpi eq, %4, %14 : vector<1x128xi32>
    %c0_6 = arith.constant 0 : index
    %c1 = arith.constant 1 : index
    %16 = vector.load %arg8[%c0_6, %c1] : memref<8x2xf32, #tpu.memory_space<vmem>>, vector<8x1xf32>
    %17 = vector.shape_cast %15 : vector<1x128xi1> to vector<1x128xi1>
    %18 = vector.broadcast %17 : vector<1x128xi1> to vector<8x128xi1>
    %19 = vector.shape_cast %16 : vector<8x1xf32> to vector<8x1xf32>
    %20 = vector.broadcast %19 : vector<8x1xf32> to vector<8x128xf32>
    %21 = arith.select %18, %20, %13 : vector<8x128xi1>, vector<8x128xf32>
    %c0_7 = arith.constant 0 : index
    %c0_8 = arith.constant 0 : index
    %c0_9 = arith.constant 0 : index
    %22 = vector.load %arg4[%c0_7, %c0_8, %c0_9] : memref<1x8x2xf32, #tpu.memory_space<vmem>>, vector<1x8x1xf32>
    %23 = vector.shape_cast %22 : vector<1x8x1xf32> to vector<8x1xf32>
    %c0_10 = arith.constant 0 : index
    %c0_11 = arith.constant 0 : index
    %c1_12 = arith.constant 1 : index
    %24 = vector.load %arg4[%c0_10, %c0_11, %c1_12] : memref<1x8x2xf32, #tpu.memory_space<vmem>>, vector<1x8x1xf32>
    %25 = vector.shape_cast %24 : vector<1x8x1xf32> to vector<8x1xf32>
    %c0_13 = arith.constant 0 : index
    %c0_14 = arith.constant 0 : index
    %c0_15 = arith.constant 0 : index
    %26 = vector.load %arg5[%c0_13, %c0_14, %c0_15] : memref<1x2x128xf32, #tpu.memory_space<vmem>>, vector<1x1x128xf32>
    %27 = vector.shape_cast %26 : vector<1x1x128xf32> to vector<1x128xf32>
    %c0_16 = arith.constant 0 : index
    %c1_17 = arith.constant 1 : index
    %c0_18 = arith.constant 0 : index
    %28 = vector.load %arg5[%c0_16, %c1_17, %c0_18] : memref<1x2x128xf32, #tpu.memory_space<vmem>>, vector<1x1x128xf32>
    %29 = vector.shape_cast %28 : vector<1x1x128xf32> to vector<1x128xf32>
    %30 = vector.broadcast %23 : vector<8x1xf32> to vector<8x128xf32>
    %31 = vector.broadcast %27 : vector<1x128xf32> to vector<8x128xf32>
    %32 = arith.subf %30, %31 : vector<8x128xf32>
    %33 = vector.broadcast %25 : vector<8x1xf32> to vector<8x128xf32>
    %34 = vector.broadcast %29 : vector<1x128xf32> to vector<8x128xf32>
    %35 = arith.subf %33, %34 : vector<8x128xf32>
    %36 = arith.mulf %32, %32 : vector<8x128xf32>
    %37 = arith.mulf %35, %35 : vector<8x128xf32>
    %38 = arith.addf %36, %37 : vector<8x128xf32>
    %39 = math.sqrt %38 : vector<8x128xf32>
    %cst_19 = arith.constant 5.000000e-02 : f32
    %40 = vector.broadcast %cst_19 : f32 to vector<8x128xf32>
    %41 = arith.mulf %40, %39 : vector<8x128xf32>
    %42 = arith.addf %21, %41 : vector<8x128xf32>
    %c0_20 = arith.constant 0 : index
    %c0_21 = arith.constant 0 : index
    %c0_22 = arith.constant 0 : index
    %43 = vector.load %arg7[%c0_20, %c0_21, %c0_22] : memref<1x8x128xf32, #tpu.memory_space<vmem>>, vector<1x8x128xf32>
    %44 = vector.shape_cast %43 : vector<1x8x128xf32> to vector<8x128xf32>
    %45 = vector.shape_cast %42 : vector<8x128xf32> to vector<1x8x128xf32>
    tpu.vector_store %arg7[%c0_20, %c0_21, %c0_22], %45 {strides = array<i32>} : memref<1x8x128xf32, #tpu.memory_space<vmem>>, vector<1x8x128xf32>,
    return
  }
  func.func @transform_0(%arg0: i32, %arg1: i32, %arg2: i32) -> (i32, i32, i32) {
    %c0_i32 = arith.constant 0 : i32
    %c0_i32_0 = arith.constant 0 : i32
    return %arg0, %arg1, %c0_i32 : i32, i32, i32
  }
  func.func @transform_1(%arg0: i32, %arg1: i32, %arg2: i32) -> (i32, i32, i32) {
    %c0_i32 = arith.constant 0 : i32
    %c0_i32_0 = arith.constant 0 : i32
    return %arg0, %arg1, %c0_i32 : i32, i32, i32
  }
  func.func @transform_2(%arg0: i32, %arg1: i32, %arg2: i32) -> (i32, i32, i32) {
    %c0_i32 = arith.constant 0 : i32
    %c0_i32_0 = arith.constant 0 : i32
    return %arg0, %c0_i32, %arg2 : i32, i32, i32
  }
  func.func @transform_3(%arg0: i32, %arg1: i32, %arg2: i32) -> (i32, i32, i32) {
    %c0_i32 = arith.constant 0 : i32
    %c0_i32_0 = arith.constant 0 : i32
    return %arg0, %c0_i32, %arg2 : i32, i32, i32
  }
  func.func @transform_4(%arg0: i32, %arg1: i32, %arg2: i32) -> (i32, i32, i32) {
    %c0_i32 = arith.constant 0 : i32
    return %arg0, %arg1, %arg2 : i32, i32, i32
  }
}

</mosaic_0001>

<llo_original>
// kernel: tpu_custom_call.1
$region0: #{tpu_custom_call.1}
  #allocation0 [shape = 'u32[]', space=smem, size = 0x4, offset = 0x4, fixed_abs, tag = 'smem constant byte address 0x4 - core index']
  #allocation1 [shape = 'u32[72,128]{1,0:T(1,128)}', space=vmem, size = 0x9000, scoped, tag = 'internal scratch']
  #allocation2 [shape = 'f32[8,2]{1,0:T(8,128)}', space=vmem, size = 0x1000, scoped, tag = 'scratch operand']
  %s0 = inlined_call_operand.vmem [shape: f32[2,8,2], index: 0, kind: input, shape index: {}]
  %s1 = inlined_call_operand.vmem [shape: f32[2,8,2], index: 1, kind: input, shape index: {}]
  %s2 = inlined_call_operand.vmem [shape: f32[2,2,128], index: 2, kind: input, shape index: {}]
  %s3 = inlined_call_operand.vmem [shape: s32[2,1,128], index: 3, kind: input, shape index: {}]
  %s4 = inlined_call_operand.hbm [shape: f32[2,8,128], index: 4, kind: output, shape index: {}]
  %s5 = sld [smem:[#allocation0]]
  $region53: #{tpu_custom_call.1} parent=0
    _
  %s7 = ssub.s32 1, %s5
  %s8 = scalar_select 0, %s7, %s5
  $region1: #{tpu_custom_call.1} parent=0
    #allocation3 [shape = 'u8[8192]{0}', space=vmem, size = 0x2000, scoped, tag = 'output window, operand 0']
    #allocation4 [shape = 's32[2]{0}', space=sflag, size = 0x8, scoped, tag = 'scoped memory for tpu_custom_call.1']
    %9 = vsyncpa [#allocation4], 0
    %s10 = scalar_lea.sflag [#allocation4], 1
    %11 = vsyncpa %s10, 0
    loop: start=0, step=1, limit=4
    $region2: #{tpu_custom_call.1} parent=1 // loop_pre_header
      _
    $region3: #{tpu_custom_call.1} parent=1 // loop_header
      %s13 = sphi 0, %s17
      %p14 = scmp.ge.s32.totalorder %s13, 4
      %s20 = sphi 0, %s39
      %s21 = sphi 0, %s35
      %s22 = sphi 0, %s31
      %s23 = sphi 0, %s20
      %s24 = sphi 0, %s21
      %s25 = sphi 0, %s22
      %s26 = sphi 0, %s23
      %s27 = sphi 0, %s24
      %s28 = sphi 0, %s25
      %s44 = sphi 0, %s46
      %s47 = sphi 0, %s44
      %s48 = sphi 0, %s47
      %s64 = sphi 0, %s48
      %s72 = sphi 0, %s74
      %s75 = sphi 0, %s72
      %s76 = sphi 0, %s75
      %s92 = sphi 0, %s76
      %s100 = sphi 0, %s102
      %s103 = sphi 0, %s100
      %s104 = sphi 0, %s103
      %s120 = sphi 0, %s104
      %s128 = sphi 0, %s130
      %s131 = sphi 0, %s128
      %s132 = sphi 0, %s131
      %s148 = sphi 0, %s132
      %s158 = sphi 0, %s160
      %s161 = sphi 0, %s158
      %s162 = sphi 0, %s161
      %s178 = sphi 0, %s162
    $region4: #{tpu_custom_call.1} parent=1 // loop_header_branch
      %16 = sbr.rel (%p14) target = $region8
    $region5: #{tpu_custom_call.1} parent=1 // loop_body
      %s18 = ssub.s32 %s13, 1
      %s19 = ssub.s32 %s13, 2
      %s29 = sadd.s32 1, %s22
      %p30 = scmp.ge.s32.totalorder %s29, 1
      %s31 = scalar_select %p30, 0, %s29
      %s32 = sadd.s32 1, %s21
      %s33 = scalar_select %p30, %s32, %s21
      %p34 = scmp.ge.s32.totalorder %s33, 1
      %s35 = scalar_select %p34, 0, %s33
      %s36 = sadd.s32 1, %s20
      %s37 = scalar_select %p34, %s36, %s20
      %p38 = scmp.ge.s32.totalorder %s37, 2
      %s39 = scalar_select %p38, 0, %s37
      %s40 = ssub.s32 %s20, %s39
      %s41 = ssub.s32 %s21, %s35
      %s42 = sor.u32 %s40, %s41
      %p43 = scmp.eq.s32.totalorder %s42, 0
      %s45 = sadd.s32 %s44, 1
      %s46 = scalar_select %p43, %s44, %s45
      %p49 = pneg %p43
      %p50 = scmp.eq.s32.totalorder %s13, 1
      %p51 = por %p49, %p50
      %p52 = scmp.ne.s32.totalorder %s44, %s47
      %p53 = scmp.eq.s32.totalorder %s13, 0
      %p54 = por %p52, %p53
      %p55 = scmp.ne.s32.totalorder %s44, %s47
      %p56 = scmp.eq.s32.totalorder %s18, 1
      %p57 = por %p55, %p56
      %p58 = scmp.ne.s32.totalorder %s47, %s48
      %p59 = scmp.eq.s32.totalorder %s18, 0
      %p60 = por %p58, %p59
      %p61 = scmp.ne.s32.totalorder %s47, %s48
      %p62 = scmp.eq.s32.totalorder %s19, 1
      %p63 = por %p61, %p62
      %p65 = scmp.ne.s32.totalorder %s48, %s64
      %p66 = scmp.eq.s32.totalorder %s19, 0
      %p67 = por %p65, %p66
      %s68 = ssub.s32 %s20, %s39
      %s69 = ssub.s32 %s21, %s35
      %s70 = sor.u32 %s68, %s69
      %p71 = scmp.eq.s32.totalorder %s70, 0
      %s73 = sadd.s32 %s72, 1
      %s74 = scalar_select %p71, %s72, %s73
      %p77 = pneg %p71
      %p78 = scmp.eq.s32.totalorder %s13, 1
      %p79 = por %p77, %p78
      %p80 = scmp.ne.s32.totalorder %s72, %s75
      %p81 = scmp.eq.s32.totalorder %s13, 0
      %p82 = por %p80, %p81
      %p83 = scmp.ne.s32.totalorder %s72, %s75
      %p84 = scmp.eq.s32.totalorder %s18, 1
      %p85 = por %p83, %p84
      %p86 = scmp.ne.s32.totalorder %s75, %s76
      %p87 = scmp.eq.s32.totalorder %s18, 0
      %p88 = por %p86, %p87
      %p89 = scmp.ne.s32.totalorder %s75, %s76
      %p90 = scmp.eq.s32.totalorder %s19, 1
      %p91 = por %p89, %p90
      %p93 = scmp.ne.s32.totalorder %s76, %s92
      %p94 = scmp.eq.s32.totalorder %s19, 0
      %p95 = por %p93, %p94
      %s96 = ssub.s32 %s20, %s39
      %s97 = ssub.s32 %s22, %s31
      %s98 = sor.u32 %s96, %s97
      %p99 = scmp.eq.s32.totalorder %s98, 0
      %s101 = sadd.s32 %s100, 1
      %s102 = scalar_select %p99, %s100, %s101
      %p105 = pneg %p99
      %p106 = scmp.eq.s32.totalorder %s13, 1
      %p107 = por %p105, %p106
      %p108 = scmp.ne.s32.totalorder %s100, %s103
      %p109 = scmp.eq.s32.totalorder %s13, 0
      %p110 = por %p108, %p109
      %p111 = scmp.ne.s32.totalorder %s100, %s103
      %p112 = scmp.eq.s32.totalorder %s18, 1
      %p113 = por %p111, %p112
      %p114 = scmp.ne.s32.totalorder %s103, %s104
      %p115 = scmp.eq.s32.totalorder %s18, 0
      %p116 = por %p114, %p115
      %p117 = scmp.ne.s32.totalorder %s103, %s104
      %p118 = scmp.eq.s32.totalorder %s19, 1
      %p119 = por %p117, %p118
      %p121 = scmp.ne.s32.totalorder %s104, %s120
      %p122 = scmp.eq.s32.totalorder %s19, 0
      %p123 = por %p121, %p122
      %s124 = ssub.s32 %s20, %s39
      %s125 = ssub.s32 %s22, %s31
      %s126 = sor.u32 %s124, %s125
      %p127 = scmp.eq.s32.totalorder %s126, 0
      %s129 = sadd.s32 %s128, 1
      %s130 = scalar_select %p127, %s128, %s129
      %p133 = pneg %p127
      %p134 = scmp.eq.s32.totalorder %s13, 1
      %p135 = por %p133, %p134
      %p136 = scmp.ne.s32.totalorder %s128, %s131
      %p137 = scmp.eq.s32.totalorder %s13, 0
      %p138 = por %p136, %p137
      %p139 = scmp.ne.s32.totalorder %s128, %s131
      %p140 = scmp.eq.s32.totalorder %s18, 1
      %p141 = por %p139, %p140
      %p142 = scmp.ne.s32.totalorder %s131, %s132
      %p143 = scmp.eq.s32.totalorder %s18, 0
      %p144 = por %p142, %p143
      %p145 = scmp.ne.s32.totalorder %s131, %s132
      %p146 = scmp.eq.s32.totalorder %s19, 1
      %p147 = por %p145, %p146
      %p149 = scmp.ne.s32.totalorder %s132, %s148
      %p150 = scmp.eq.s32.totalorder %s19, 0
      %p151 = por %p149, %p150
      %s152 = ssub.s32 %s20, %s39
      %s153 = ssub.s32 %s21, %s35
      %s154 = sor.u32 %s152, %s153
      %s155 = ssub.s32 %s22, %s31
      %s156 = sor.u32 %s154, %s155
      %p157 = scmp.eq.s32.totalorder %s156, 0
      %s159 = sadd.s32 %s158, 1
      %s160 = scalar_select %p157, %s158, %s159
      %p163 = pneg %p157
      %p164 = scmp.eq.s32.totalorder %s13, 1
      %p165 = por %p163, %p164
      %p166 = scmp.ne.s32.totalorder %s158, %s161
      %p167 = scmp.eq.s32.totalorder %s13, 0
      %p168 = por %p166, %p167
      %p169 = scmp.ne.s32.totalorder %s158, %s161
      %p170 = scmp.eq.s32.totalorder %s18, 1
      %p171 = por %p169, %p170
      %p172 = scmp.ne.s32.totalorder %s161, %s162
      %p173 = scmp.eq.s32.totalorder %s18, 0
      %p174 = por %p172, %p173
      %p175 = scmp.ne.s32.totalorder %s161, %s162
      %p176 = scmp.eq.s32.totalorder %s19, 1
      %p177 = por %p175, %p176
      %p179 = scmp.ne.s32.totalorder %s162, %s178
      %p180 = scmp.eq.s32.totalorder %s19, 0
      %p181 = por %p179, %p180
      %p182 = scmp.le.s32.totalorder 1, %s13
      %p183 = scmp.lt.s32.totalorder %s13, 3
      %p184 = pnand %p182, %p183
      %p185 = pneg %p184
      // Predicated region
      $region9: #{tpu_custom_call.1} parent=5 // pred_check
        _
      $region10: #{tpu_custom_call.1} parent=5 // pred_check_branch
        %187 = sbr.rel (%p184) target = $region12
      $region11: #{tpu_custom_call.1} parent=5 // pred_region
        %s188 = ssub.s32 %s13, 1
      $region12: #{tpu_custom_call.1} parent=5 // pred_fallthru
        _
      %p189 = scmp.lt.s32.totalorder %s13, 2
      // Predicated region
      $region13: #{tpu_custom_call.1} parent=5 // pred_check
        %p190 = pneg %p189
      $region14: #{tpu_custom_call.1} parent=5 // pred_check_branch
        %192 = sbr.rel (%p190) target = $region16
      $region15: #{tpu_custom_call.1} parent=5 // pred_region
        // Predicated region
        $region17: #{tpu_custom_call.1} parent=15 // pred_check
          %p193 = pneg %p54
        $region18: #{tpu_custom_call.1} parent=15 // pred_check_branch
          %195 = sbr.rel (%p193) target = $region20
        $region19: #{tpu_custom_call.1} parent=15 // pred_region
          %p196 = scmp.lt.s32.totalorder %s20, 1
          %s197 = scalar_select %p196, %s20, 1
          %p198 = scmp.lt.s32.totalorder %s21, 0
          %s199 = scalar_select %p198, %s21, 0
          %s200 = sadd.s32 %s199, %s197
          %s201 = smul.addr %s200, 8
          %s202 = scalar_lea.vmem %s0, %s201
        $region20: #{tpu_custom_call.1} parent=15 // pred_fallthru
          _
        // Predicated region
        $region21: #{tpu_custom_call.1} parent=15 // pred_check
          %p203 = pneg %p82
        $region22: #{tpu_custom_call.1} parent=15 // pred_check_branch
          %205 = sbr.rel (%p203) target = $region24
        $region23: #{tpu_custom_call.1} parent=15 // pred_region
          %p206 = scmp.lt.s32.totalorder %s20, 1
          %s207 = scalar_select %p206, %s20, 1
          %p208 = scmp.lt.s32.totalorder %s21, 0
          %s209 = scalar_select %p208, %s21, 0
          %s210 = sadd.s32 %s209, %s207
          %s211 = smul.addr %s210, 8
          %s212 = scalar_lea.vmem %s1, %s211
        $region24: #{tpu_custom_call.1} parent=15 // pred_fallthru
          _
        // Predicated region
        $region25: #{tpu_custom_call.1} parent=15 // pred_check
          %p213 = pneg %p110
        $region26: #{tpu_custom_call.1} parent=15 // pred_check_branch
          %215 = sbr.rel (%p213) target = $region28
        $region27: #{tpu_custom_call.1} parent=15 // pred_region
          %p216 = scmp.lt.s32.totalorder %s20, 1
          %s217 = scalar_select %p216, %s20, 1
          %p218 = scmp.lt.s32.totalorder %s22, 0
          %s219 = scalar_select %p218, %s22, 0
          %s220 = sadd.s32 %s219, %s217
          %s221 = smul.addr %s220, 2
          %s222 = scalar_lea.vmem %s2, %s221
        $region28: #{tpu_custom_call.1} parent=15 // pred_fallthru
          _
        // Predicated region
        $region29: #{tpu_custom_call.1} parent=15 // pred_check
          %p223 = pneg %p138
        $region30: #{tpu_custom_call.1} parent=15 // pred_check_branch
          %225 = sbr.rel (%p223) target = $region32
        $region31: #{tpu_custom_call.1} parent=15 // pred_region
          %p226 = scmp.lt.s32.totalorder %s20, 1
          %s227 = scalar_select %p226, %s20, 1
          %p228 = scmp.lt.s32.totalorder %s22, 0
          %s229 = scalar_select %p228, %s22, 0
          %s230 = sadd.s32 %s229, %s227
          %s231 = scalar_lea.vmem %s3, %s230
        $region32: #{tpu_custom_call.1} parent=15 // pred_fallthru
          _
      $region16: #{tpu_custom_call.1} parent=5 // pred_fallthru
        _
      %p232 = scmp.le.s32.totalorder 1, %s13
      %p233 = scmp.lt.s32.totalorder %s13, 3
      %p234 = pnand %p232, %p233
      %p235 = pneg %p234
      // Predicated region
      $region33: #{tpu_custom_call.1} parent=5 // pred_check
        _
      $region34: #{tpu_custom_call.1} parent=5 // pred_check_branch
        %237 = sbr.rel (%p234) target = $region36
      $region35: #{tpu_custom_call.1} parent=5 // pred_region
        %s238 = ssub.s32 %s13, 1
        %p239 = scmp.lt.s32.totalorder %s23, 1
        %s240 = scalar_select %p239, %s23, 1
        %p241 = scmp.lt.s32.totalorder %s24, 0
        %s242 = scalar_select %p241, %s24, 0
        %s243 = sadd.s32 %s242, %s240
        %s244 = smul.addr %s243, 8
        %s245 = scalar_lea.vmem %s0, %s244
        %p246 = pneg %p60
        %p247 = pneg %p57
        %p248 = scmp.lt.s32.totalorder %s23, 1
        %s249 = scalar_select %p248, %s23, 1
        %p250 = scmp.lt.s32.totalorder %s24, 0
        %s251 = scalar_select %p250, %s24, 0
        %s252 = sadd.s32 %s251, %s249
        %s253 = smul.addr %s252, 8
        %s254 = scalar_lea.vmem %s1, %s253
        %p255 = pneg %p88
        %p256 = pneg %p85
        %p257 = scmp.lt.s32.totalorder %s23, 1
        %s258 = scalar_select %p257, %s23, 1
        %p259 = scmp.lt.s32.totalorder %s25, 0
        %s260 = scalar_select %p259, %s25, 0
        %s261 = sadd.s32 %s260, %s258
        %s262 = smul.addr %s261, 2
        %s263 = scalar_lea.vmem %s2, %s262
        %p264 = pneg %p116
        %p265 = pneg %p113
        %p266 = scmp.lt.s32.totalorder %s23, 1
        %s267 = scalar_select %p266, %s23, 1
        %p268 = scmp.lt.s32.totalorder %s25, 0
        %s269 = scalar_select %p268, %s25, 0
        %s270 = sadd.s32 %s269, %s267
        %s271 = scalar_lea.vmem %s3, %s270
        %p272 = pneg %p144
        %p273 = pneg %p141
        %p274 = pneg %p174
        %p275 = pneg %p171
        %s276 = sand.u32 %s161, 1
        %s277 = scalar_lea.sflag [#allocation4], %s276
        %s278 = sand.u32 %s161, 1
        %s279 = smul.addr %s278, 8
        %s280 = scalar_lea.vmem [#allocation3], %s279
        %p281 = scmp.lt.s32.totalorder %s23, 1
        %s282 = scalar_select %p281, %s23, 1
        %p283 = scmp.lt.s32.totalorder %s24, 0
        %s284 = scalar_select %p283, %s24, 0
        %s285 = sadd.s32 %s284, %s282
        %s286 = smul.addr %s285, 8
        %s287 = scalar_lea.vmem %s0, %s286
        %p288 = scmp.lt.s32.totalorder %s23, 1
        %s289 = scalar_select %p288, %s23, 1
        %p290 = scmp.lt.s32.totalorder %s24, 0
        %s291 = scalar_select %p290, %s24, 0
        %s292 = sadd.s32 %s291, %s289
        %s293 = smul.addr %s292, 8
        %s294 = scalar_lea.vmem %s1, %s293
        %p295 = scmp.lt.s32.totalorder %s23, 1
        %s296 = scalar_select %p295, %s23, 1
        %p297 = scmp.lt.s32.totalorder %s25, 0
        %s298 = scalar_select %p297, %s25, 0
        %s299 = sadd.s32 %s298, %s296
        %s300 = smul.addr %s299, 2
        %s301 = scalar_lea.vmem %s2, %s300
        %p302 = scmp.lt.s32.totalorder %s23, 1
        %s303 = scalar_select %p302, %s23, 1
        %p304 = scmp.lt.s32.totalorder %s25, 0
        %s305 = scalar_select %p304, %s25, 0
        %s306 = sadd.s32 %s305, %s303
        %s307 = scalar_lea.vmem %s3, %s306
        %p308 = scmp.eq.s32.totalorder %s25, 0
        // Predicated region
        $region37: #{tpu_custom_call.1} parent=35 // pred_check
          %p309 = pneg %p308
        $region38: #{tpu_custom_call.1} parent=35 // pred_check_branch
          %311 = sbr.rel (%p309) target = $region40
        $region39: #{tpu_custom_call.1} parent=35 // pred_region
          %v312 = vld [vmem:[%s287] sm:$0xff]
          %314 = vrot.lane.b32.xlu0 %v312, 1
          %v315 = vpop.permute.xlu0 %314
          %v317 = vsub.f32 %v312, %v315
          %v318 = vsub.f32 0.0, %v317
          %v319 = vmul.f32 %v318, 1.442695
          %v320 = vpow.pop %v319
          %v321 = vadd.f32 %v320, 1.0
          %v322 = vrcp.pop %v321
          %v323 = vmul.f32 %v321, %v322
          %v324 = vsub.f32 1.0, %v323
          %v325 = vmul.f32 %v322, %v324
          %v326 = vadd.f32 %v322, %v325
          %vm327 = vweird.f32 %v321
          %vm328 = vweird.f32 %v322
          %vm329 = vmor %vm327, %vm328
          %v330 = vsel %vm329, %v322, %v326
          %v331 = vand.u32 2147483647, %v321
          %vm332 = vcmp.eq.f32.partialorder %v331, 8.507059e+37
          %v333 = vand.u32 %v321, 2147483648
          %v334 = vor.u32 1.1754944e-38, %v333
          %v335 = vsel %vm332, %v334, %v330
          %v336 = vmul.f32 1.0, %v335
          %v337 = vmul.f32 %v336, -1.0
          %vm338 = vcmask 15368
          %339 = vst.msk [vmem:[#allocation2] sm:$0xff] %vm338, %v337
          %v340 = vsub.f32 1.0, %v336
          %v341 = vmul.f32 %v340, -1.0
          %343 = vrot.lane.b32.xlu0 %v341, 127
          %v344 = vpop.permute.xlu0 %343
          %vm346 = vcmask 7168
          %347 = vst.msk [vmem:[#allocation2] sm:$0xff] %vm346, %v344
        $region40: #{tpu_custom_call.1} parent=35 // pred_fallthru
          _
        %v348 = vld [vmem:[%s307] sm:$0x1]
        %vm349 = vcmp.eq.s32.totalorder %v348, 0
        %v350 = vld [vmem:[#allocation2] sm:$0xff]
        %v351 = vsel %vm349, 1, 0
        %v352 = vperm.slane %v351, 0
        %vm353 = vcmp.eq.s32.totalorder %v352, 1
        %355 = vset.pattern.permute.xlu0 0
        %356 = vperm.xlu0 %355, %v350
        %v357 = vpop.permute.xlu0 %356
        %v359 = vsel %vm353, %v357, 0.0
        %vm360 = vcmp.eq.s32.totalorder %v348, 1
        %v361 = vsel %vm360, 1, 0
        %v362 = vperm.slane %v361, 0
        %vm363 = vcmp.eq.s32.totalorder %v362, 1
        %364 = vset.pattern.permute.xlu0 1
        %365 = vperm.xlu0 %364, %v350
        %v366 = vpop.permute.xlu0 %365
        %v368 = vsel %vm363, %v366, %v359
        %v369 = vld [vmem:[%s294] sm:$0xff]
        %v370 = vld [vmem:[%s301] sm:$0x1]
        %v371 = vld [vmem:[%s301 + $0x1] sm:$0x1]
        %373 = vset.pattern.permute.xlu0 0
        %374 = vperm.xlu0 %373, %v369
        %v375 = vpop.permute.xlu0 %374
        %v377 = vperm.slane %v370, 0
        %v378 = vsub.f32 %v375, %v377
        %379 = vset.pattern.permute.xlu0 1
        %380 = vperm.xlu0 %379, %v369
        %v381 = vpop.permute.xlu0 %380
        %v383 = vperm.slane %v371, 0
        %v384 = vsub.f32 %v381, %v383
        %v385 = vmul.f32 %v378, %v378
        %v386 = vmul.f32 %v384, %v384
        %v387 = vadd.f32 %v385, %v386
        %v388 = vrsqrt.pop %v387
        %v389 = vmul.f32 %v388, %v387
        %v390 = vmul.f32 %v389, %v388
        %v391 = vmul.f32 0.5, %v390
        %v392 = vsub.f32 1.5, %v391
        %v393 = vmul.f32 %v388, %v392
        %v394 = vmul.f32 %v387, %v393
        %vm395 = vcmp.eq.f32.partialorder %v387, inf
        %v396 = vsel %vm395, %v387, %v394
        %vm397 = vcmp.eq.f32.partialorder %v387, 0.0
        %v398 = vand.u32 %v387, 2147483648
        %v399 = vsel %vm397, %v398, %v396
        %v400 = vmul.f32 %v399, 0.05
        %v401 = vadd.f32 %v368, %v400
        %402 = vst [vmem:[%s280] sm:$0xff] %v401
        %s403 = sand.u32 %s161, 1
        %s404 = scalar_lea.sflag [#allocation4], %s403
        %s405 = sand.u32 %s161, 1
        %s406 = smul.addr %s405, 8
        %s407 = scalar_lea.vmem [#allocation3], %s406
        // Predicated region
        $region41: #{tpu_custom_call.1} parent=35 // pred_check
          %p408 = pneg %p171
        $region42: #{tpu_custom_call.1} parent=35 // pred_check_branch
          %410 = sbr.rel (%p408) target = $region44
        $region43: #{tpu_custom_call.1} parent=35 // pred_region
          %412 = vsyncadd %s404, 0
          %s413 = sadd.s32 %s25, %s24
          %s414 = sadd.s32 %s413, %s23
          %s415 = smul.addr %s414, 8
          %s416 = scalar_lea.hbm %s4, %s415
          %s418 = sshll.u32 %s407, 4
          %s419 = int_to_ptr.vmem [resolvable:$true] %s418
          %s420 = sshll.u32 %s416, 4
          %s421 = int_to_ptr.hbm [resolvable:$true] %s420
          %423 = dma.vmem_to_hbm [thread:$0]  %s419, 128, %s421, %s404
        $region44: #{tpu_custom_call.1} parent=35 // pred_fallthru
          _
      $region36: #{tpu_custom_call.1} parent=5 // pred_fallthru
        _
      %p424 = scmp.le.s32.totalorder 2, %s13
      // Predicated region
      $region45: #{tpu_custom_call.1} parent=5 // pred_check
        %p425 = pneg %p424
      $region46: #{tpu_custom_call.1} parent=5 // pred_check_branch
        %427 = sbr.rel (%p425) target = $region48
      $region47: #{tpu_custom_call.1} parent=5 // pred_region
        %s428 = ssub.s32 %s13, 2
        // Predicated region
        $region49: #{tpu_custom_call.1} parent=47 // pred_check
          %p429 = pneg %p177
        $region50: #{tpu_custom_call.1} parent=47 // pred_check_branch
          %431 = sbr.rel (%p429) target = $region52
        $region51: #{tpu_custom_call.1} parent=47 // pred_region
          %s432 = sand.u32 %s162, 1
          %s433 = scalar_lea.sflag [#allocation4], %s432
          %s434 = sand.u32 %s162, 1
          %s435 = smul.addr %s434, 8
          %s436 = scalar_lea.vmem [#allocation3], %s435
          %438 = dma.done %s433, 128
        $region52: #{tpu_custom_call.1} parent=47 // pred_fallthru
          _
      $region48: #{tpu_custom_call.1} parent=5 // pred_fallthru
        _
    $region6: #{tpu_custom_call.1} parent=1 // loop_footer
      %s17 = sadd.s32 1, %s13
    $region7: #{tpu_custom_call.1} parent=1 // loop_footer_branch
      %12 = sbr.rel target = $region3
    $region8: #{tpu_custom_call.1} parent=1 // loop_exit
      _
    %439 = vsyncpa [#allocation4], 1
    %s440 = scalar_lea.sflag [#allocation4], 1
    %441 = vsyncpa %s440, 1

</llo_original>
